<compile_context>
chip_gen: v7x
topology: tpu7x:2x2x1
jax: 0.10.0
libtpu: 0.0.40
codegen_flags: <defaults>
</compile_context>

<pallas_src>
import functools
import math

import jax
import jax.numpy as jnp
from jax.experimental import pallas as pl
from jax.experimental.pallas import tpu as pltpu

# ------------------------- small config -------------------------
B = 2          # batch
S = 8          # sequence length
H = 32         # hidden_size
EPS = 1e-12    # layer_norm_eps


# ------------------------- in-kernel math -------------------------
def _erf_approx(x):
    # TODO(synk): torch.erf is approximated with Abramowitz & Stegun 7.1.26
    # (max abs error ~1.5e-7, i.e. float32-level) because lax.erf has no
    # guaranteed Mosaic lowering; only exp / abs / where are used (EUP/VPU).
    a1, a2, a3, a4, a5 = (0.254829592, -0.284496736, 1.421413741,
                          -1.453152027, 1.061405429)
    p = 0.3275911
    ax = jnp.abs(x)
    t = 1.0 / (1.0 + p * ax)
    poly = ((((a5 * t + a4) * t + a3) * t + a2) * t + a1) * t
    y = 1.0 - poly * jnp.exp(-ax * ax)
    return jnp.where(x >= 0.0, y, -y)


def _gelu_erf(x):
    # Matches the reference: x * 0.5 * (1 + erf(x / sqrt(2)))
    return x * 0.5 * (1.0 + _erf_approx(x * (1.0 / math.sqrt(2.0))))


# ------------------------- fused Pallas kernel -------------------------
def _head_transform_kernel(x_ref, w_ref, b_ref, g_ref, beta_ref, o_ref, *, eps):
    # dense: (tm, H) @ (H, H) + bias  -> MXU, f32 accumulation
    h = (jnp.dot(x_ref[...], w_ref[...], preferred_element_type=jnp.float32)
         + b_ref[...])
    # activation (erf-GELU), in-kernel
    h = _gelu_erf(h)
    # LayerNorm over the feature axis (biased variance, matches PyTorch)
    mu = jnp.mean(h, axis=-1, keepdims=True)
    var = jnp.mean((h - mu) ** 2, axis=-1, keepdims=True)
    inv = jax.lax.rsqrt(var + eps)
    o_ref[...] = (h - mu) * inv * g_ref[...] + beta_ref[...]


def visual_prediction_head_transform(params, hidden_states, *, eps=EPS):
    """Fused dense + GELU + LayerNorm.  hidden_states: (..., H)."""
    orig_shape = hidden_states.shape
    h_dim = orig_shape[-1]
    x2d = hidden_states.reshape(-1, h_dim).astype(jnp.float32)
    m = x2d.shape[0]

    # Row tile: whole slab when small, 256-row tiles otherwise. Always a
    # multiple of 8 (sublane) via padding so the BlockSpec tiling rule holds.
    if m <= 256:
        tm = max(8, -(-m // 8) * 8)          # round m up to a multiple of 8
    else:
        tm = 256
    m_pad = -(-m // tm) * tm
    if m_pad != m:
        x2d = jnp.pad(x2d, ((0, m_pad - m), (0, 0)))
    grid = (m_pad // tm,)

    out = pl.pallas_call(
        functools.partial(_head_transform_kernel, eps=eps),
        out_shape=jax.ShapeDtypeStruct((m_pad, h_dim), jnp.float32),
        grid=grid,
        in_specs=[
            pl.BlockSpec((tm, h_dim), lambda i: (i, 0)),      # activations
            pl.BlockSpec((h_dim, h_dim), lambda i: (0, 0)),   # dense weight
            pl.BlockSpec((1, h_dim), lambda i: (0, 0)),       # dense bias
            pl.BlockSpec((1, h_dim), lambda i: (0, 0)),       # LN gamma
            pl.BlockSpec((1, h_dim), lambda i: (0, 0)),       # LN beta
        ],
        out_specs=pl.BlockSpec((tm, h_dim), lambda i: (i, 0)),
        compiler_params=pltpu.CompilerParams(
            dimension_semantics=("parallel",)),
    )(
        x2d,
        params["dense_w"].astype(jnp.float32),                    # (H, H), x @ W
        params["dense_b"].reshape(1, h_dim).astype(jnp.float32),  # (1, H)
        params["ln_g"].reshape(1, h_dim).astype(jnp.float32),     # (1, H)
        params["ln_b"].reshape(1, h_dim).astype(jnp.float32),     # (1, H)
    )
    if m_pad != m:
        out = out[:m]
    return out.reshape(orig_shape)


# ------------------------- pure-JAX reference -------------------------
def _reference(params, hidden_states, eps=EPS):
    h = hidden_states @ params["dense_w"] + params["dense_b"]
    h = h * 0.5 * (1.0 + jax.scipy.special.erf(h / math.sqrt(2.0)))
    mu = jnp.mean(h, axis=-1, keepdims=True)
    var = jnp.mean((h - mu) ** 2, axis=-1, keepdims=True)
    return (h - mu) / jnp.sqrt(var + eps) * params["ln_g"] + params["ln_b"]


# ------------------------- deterministic params -------------------------
def init_params(key):
    k_w, k_b = jax.random.split(key, 2)
    return dict(
        dense_w=jax.random.normal(k_w, (H, H), jnp.float32) * 0.02,
        dense_b=jax.random.normal(k_b, (H,), jnp.float32) * 0.02,
        ln_g=jnp.ones((H,), jnp.float32),
        ln_b=jnp.zeros((H,), jnp.float32),
    )


if __name__ == "__main__":
    key = jax.random.PRNGKey(0)
    k_param, k_x = jax.random.split(key, 2)
    params = init_params(k_param)

    hidden_states = jax.random.normal(k_x, (B, S, H), jnp.float32)

    fwd = jax.jit(visual_prediction_head_transform)
    out = fwd(params, hidden_states)
    jax.block_until_ready(out)

    assert out.shape == (B, S, H)
    ref = _reference(params, hidden_states)
    assert jnp.allclose(out, ref, atol=1e-5, rtol=1e-5), (
        float(jnp.max(jnp.abs(out - ref))))
    print("KERNEL_OK")
</pallas_src>

<mosaic_0001>
module attributes {stable_mosaic.version = 11 : i64} {
  func.func @_head_transform_kernel(%arg0: i32, %arg1: memref<16x32xf32, #tpu.memory_space<vmem>>, %arg2: memref<32x32xf32, #tpu.memory_space<vmem>>, %arg3: memref<1x32xf32, #tpu.memory_space<vmem>>, %arg4: memref<1x32xf32, #tpu.memory_space<vmem>>, %arg5: memref<1x32xf32, #tpu.memory_space<vmem>>, %arg6: memref<16x32xf32, #tpu.memory_space<vmem>>) attributes {dimension_semantics = [#tpu.dimension_semantics<parallel>], iteration_bounds = array<i64: 1>, scalar_prefetch = 0 : i64, scratch_operands = 0 : i64, tpu.core_type = #tpu.core_type<tc>, window_params = [{transform_indices = @transform_0, window_bounds = array<i64: 16, 32>}, {pipeline_mode = #tpu.pipeline_mode<synchronous>, transform_indices = @transform_1, window_bounds = array<i64: 32, 32>}, {pipeline_mode = #tpu.pipeline_mode<synchronous>, transform_indices = @transform_2, window_bounds = array<i64: 1, 32>}, {pipeline_mode = #tpu.pipeline_mode<synchronous>, transform_indices = @transform_3, window_bounds = array<i64: 1, 32>}, {pipeline_mode = #tpu.pipeline_mode<synchronous>, transform_indices = @transform_4, window_bounds = array<i64: 1, 32>}, {transform_indices = @transform_5, window_bounds = array<i64: 16, 32>}]} {
    %c0 = arith.constant 0 : index
    %c0_0 = arith.constant 0 : index
    %0 = vector.load %arg1[%c0, %c0_0] : memref<16x32xf32, #tpu.memory_space<vmem>>, vector<16x32xf32>
    %c0_1 = arith.constant 0 : index
    %c0_2 = arith.constant 0 : index
    %1 = vector.load %arg2[%c0_1, %c0_2] : memref<32x32xf32, #tpu.memory_space<vmem>>, vector<32x32xf32>
    %cst = arith.constant dense<0.000000e+00> : vector<16x32xf32>
    %2 = tpu.matmul %0, %1, %cst {dimension_numbers = #tpu.dot_dimension_numbers<[1], [0], [0], [1], [0, 0, 1, 1], [], []>} : vector<16x32xf32>, vector<32x32xf32>, vector<16x32xf32> -> vector<16x32xf32>
    %c0_3 = arith.constant 0 : index
    %c0_4 = arith.constant 0 : index
    %3 = vector.load %arg3[%c0_3, %c0_4] : memref<1x32xf32, #tpu.memory_space<vmem>>, vector<1x32xf32>
    %4 = vector.broadcast %3 : vector<1x32xf32> to vector<16x32xf32>
    %5 = arith.addf %2, %4 : vector<16x32xf32>
    %cst_5 = arith.constant 5.000000e-01 : f32
    %6 = vector.broadcast %cst_5 : f32 to vector<16x32xf32>
    %7 = arith.mulf %5, %6 : vector<16x32xf32>
    %cst_6 = arith.constant 0.707106769 : f32
    %8 = vector.broadcast %cst_6 : f32 to vector<16x32xf32>
    %9 = arith.mulf %5, %8 : vector<16x32xf32>
    %10 = math.absf %9 : vector<16x32xf32>
    %cst_7 = arith.constant 0.327591091 : f32
    %11 = vector.broadcast %cst_7 : f32 to vector<16x32xf32>
    %12 = arith.mulf %11, %10 : vector<16x32xf32>
    %cst_8 = arith.constant 1.000000e+00 : f32
    %13 = vector.broadcast %cst_8 : f32 to vector<16x32xf32>
    %14 = arith.addf %13, %12 : vector<16x32xf32>
    %cst_9 = arith.constant 1.000000e+00 : f32
    %15 = vector.broadcast %cst_9 : f32 to vector<16x32xf32>
    %16 = arith.divf %15, %14 : vector<16x32xf32>
    %cst_10 = arith.constant 1.06140542 : f32
    %17 = vector.broadcast %cst_10 : f32 to vector<16x32xf32>
    %18 = arith.mulf %17, %16 : vector<16x32xf32>
    %cst_11 = arith.constant -1.45315206 : f32
    %19 = vector.broadcast %cst_11 : f32 to vector<16x32xf32>
    %20 = arith.addf %18, %19 : vector<16x32xf32>
    %21 = arith.mulf %20, %16 : vector<16x32xf32>
    %cst_12 = arith.constant 1.42141378 : f32
    %22 = vector.broadcast %cst_12 : f32 to vector<16x32xf32>
    %23 = arith.addf %21, %22 : vector<16x32xf32>
    %24 = arith.mulf %23, %16 : vector<16x32xf32>
    %cst_13 = arith.constant -0.284496725 : f32
    %25 = vector.broadcast %cst_13 : f32 to vector<16x32xf32>
    %26 = arith.addf %24, %25 : vector<16x32xf32>
    %27 = arith.mulf %26, %16 : vector<16x32xf32>
    %cst_14 = arith.constant 0.254829586 : f32
    %28 = vector.broadcast %cst_14 : f32 to vector<16x32xf32>
    %29 = arith.addf %27, %28 : vector<16x32xf32>
    %30 = arith.mulf %29, %16 : vector<16x32xf32>
    %cst_15 = arith.constant 0.000000e+00 : f32
    %31 = vector.broadcast %cst_15 : f32 to vector<16x32xf32>
    %32 = arith.subf %31, %10 : vector<16x32xf32>
    %33 = arith.mulf %32, %10 : vector<16x32xf32>
    %34 = math.exp %33 : vector<16x32xf32>
    %35 = arith.mulf %30, %34 : vector<16x32xf32>
    %cst_16 = arith.constant 1.000000e+00 : f32
    %36 = vector.broadcast %cst_16 : f32 to vector<16x32xf32>
    %37 = arith.subf %36, %35 : vector<16x32xf32>
    %cst_17 = arith.constant 0.000000e+00 : f32
    %38 = vector.broadcast %cst_17 : f32 to vector<16x32xf32>
    %39 = arith.cmpf oge, %9, %38 : vector<16x32xf32>
    %cst_18 = arith.constant 0.000000e+00 : f32
    %40 = vector.broadcast %cst_18 : f32 to vector<16x32xf32>
    %41 = arith.subf %40, %37 : vector<16x32xf32>
    %42 = arith.select %39, %37, %41 : vector<16x32xi1>, vector<16x32xf32>
    %cst_19 = arith.constant 1.000000e+00 : f32
    %43 = vector.broadcast %cst_19 : f32 to vector<16x32xf32>
    %44 = arith.addf %43, %42 : vector<16x32xf32>
    %45 = arith.mulf %7, %44 : vector<16x32xf32>
    %cst_20 = arith.constant dense<0.000000e+00> : vector<16xf32>
    %46 = vector.multi_reduction <add>, %45, %cst_20 [1] : vector<16x32xf32> to vector<16xf32>
    %47 = vector.shape_cast %46 : vector<16xf32> to vector<16x1xf32>
    %cst_21 = arith.constant 3.200000e+01 : f32
    %48 = vector.broadcast %cst_21 : f32 to vector<16x1xf32>
    %49 = arith.divf %47, %48 : vector<16x1xf32>
    %50 = vector.broadcast %49 : vector<16x1xf32> to vector<16x32xf32>
    %51 = arith.subf %45, %50 : vector<16x32xf32>
    %52 = arith.mulf %51, %51 : vector<16x32xf32>
    %cst_22 = arith.constant dense<0.000000e+00> : vector<16xf32>
    %53 = vector.multi_reduction <add>, %52, %cst_22 [1] : vector<16x32xf32> to vector<16xf32>
    %54 = vector.shape_cast %53 : vector<16xf32> to vector<16x1xf32>
    %cst_23 = arith.constant 3.200000e+01 : f32
    %55 = vector.broadcast %cst_23 : f32 to vector<16x1xf32>
    %56 = arith.divf %54, %55 : vector<16x1xf32>
    %cst_24 = arith.constant 9.99999996E-13 : f32
    %57 = vector.broadcast %cst_24 : f32 to vector<16x1xf32>
    %58 = arith.addf %56, %57 : vector<16x1xf32>
    %59 = math.rsqrt %58 : vector<16x1xf32>
    %60 = vector.broadcast %49 : vector<16x1xf32> to vector<16x32xf32>
    %61 = arith.subf %45, %60 : vector<16x32xf32>
    %62 = vector.broadcast %59 : vector<16x1xf32> to vector<16x32xf32>
    %63 = arith.mulf %61, %62 : vector<16x32xf32>
    %c0_25 = arith.constant 0 : index
    %c0_26 = arith.constant 0 : index
    %64 = vector.load %arg4[%c0_25, %c0_26] : memref<1x32xf32, #tpu.memory_space<vmem>>, vector<1x32xf32>
    %65 = vector.broadcast %64 : vector<1x32xf32> to vector<16x32xf32>
    %66 = arith.mulf %63, %65 : vector<16x32xf32>
    %c0_27 = arith.constant 0 : index
    %c0_28 = arith.constant 0 : index
    %67 = vector.load %arg5[%c0_27, %c0_28] : memref<1x32xf32, #tpu.memory_space<vmem>>, vector<1x32xf32>
    %68 = vector.broadcast %67 : vector<1x32xf32> to vector<16x32xf32>
    %69 = arith.addf %66, %68 : vector<16x32xf32>
    %c0_29 = arith.constant 0 : index
    %c0_30 = arith.constant 0 : index
    %70 = vector.load %arg6[%c0_29, %c0_30] : memref<16x32xf32, #tpu.memory_space<vmem>>, vector<16x32xf32>
    tpu.vector_store %arg6[%c0_29, %c0_30], %69 {strides = array<i32>} : memref<16x32xf32, #tpu.memory_space<vmem>>, vector<16x32xf32>,
    return
  }
  func.func @transform_0(%arg0: i32) -> (i32, i32) {
    %c0_i32 = arith.constant 0 : i32
    %c0_i32_0 = arith.constant 0 : i32
    return %arg0, %c0_i32 : i32, i32
  }
  func.func @transform_1(%arg0: i32) -> (i32, i32) {
    %c0_i32 = arith.constant 0 : i32
    %c0_i32_0 = arith.constant 0 : i32
    %c0_i32_1 = arith.constant 0 : i32
    return %c0_i32, %c0_i32_0 : i32, i32
  }
  func.func @transform_2(%arg0: i32) -> (i32, i32) {
    %c0_i32 = arith.constant 0 : i32
    %c0_i32_0 = arith.constant 0 : i32
    %c0_i32_1 = arith.constant 0 : i32
    return %c0_i32, %c0_i32_0 : i32, i32
  }
  func.func @transform_3(%arg0: i32) -> (i32, i32) {
    %c0_i32 = arith.constant 0 : i32
    %c0_i32_0 = arith.constant 0 : i32
    %c0_i32_1 = arith.constant 0 : i32
    return %c0_i32, %c0_i32_0 : i32, i32
  }
  func.func @transform_4(%arg0: i32) -> (i32, i32) {
    %c0_i32 = arith.constant 0 : i32
    %c0_i32_0 = arith.constant 0 : i32
    %c0_i32_1 = arith.constant 0 : i32
    return %c0_i32, %c0_i32_0 : i32, i32
  }
  func.func @transform_5(%arg0: i32) -> (i32, i32) {
    %c0_i32 = arith.constant 0 : i32
    %c0_i32_0 = arith.constant 0 : i32
    return %arg0, %c0_i32 : i32, i32
  }
}

</mosaic_0001>

<llo_original>
// kernel: visual_prediction_head_transform.1
$region0: #{visual_prediction_head_transform.1}
  #allocation0 [shape = 'u32[]', space=smem, size = 0x4, offset = 0x4, fixed_abs, tag = 'smem constant byte address 0x4 - core index']
  #allocation1 [shape = 'u32[144,128]{1,0:T(1,128)}', space=vmem, size = 0x12000, scoped, tag = 'internal scratch']
  %s0 = inlined_call_operand.vmem [shape: f32[16,32], index: 0, kind: input, shape index: {}]
  %s1 = inlined_call_operand.hbm [shape: f32[32,32], index: 1, kind: input, shape index: {}]
  %s2 = inlined_call_operand.vmem [shape: f32[1,32], index: 2, kind: input, shape index: {}]
  %s3 = inlined_call_operand.vmem [shape: f32[1,32], index: 3, kind: input, shape index: {}]
  %s4 = inlined_call_operand.vmem [shape: f32[1,32], index: 4, kind: input, shape index: {}]
  %s5 = inlined_call_operand.hbm [shape: f32[16,32], index: 5, kind: output, shape index: {}]
  %s6 = sld [smem:[#allocation0]]
  $region34: #{visual_prediction_head_transform.1} parent=0
    _
  %s8 = ssub.s32 1, %s6
  %s9 = scalar_select 0, %s8, %s6
  $region1: #{visual_prediction_head_transform.1} parent=0
    #allocation2 [shape = 'u8[16384]{0}', space=vmem, size = 0x4000, scoped, tag = 'input window, operand 1, single buffered']
    #allocation3 [shape = 's32[1]{0}', space=sflag, size = 0x4, scoped, tag = 'scoped memory for visual_prediction_head_transform.1']
    #allocation4 [shape = 's32[1]{0}', space=sflag, size = 0x4, scoped, tag = 'scoped memory for visual_prediction_head_transform.1']
    #allocation5 [shape = 'u8[8192]{0}', space=vmem, size = 0x2000, scoped, tag = 'output window, operand 0, single buffered']
    %10 = vsyncpa [#allocation3], 0
    %11 = vsyncpa [#allocation4], 0
    // Predicated region
    $region2: #{visual_prediction_head_transform.1} parent=1 // pred_check
      _
    $region3: #{visual_prediction_head_transform.1} parent=1 // pred_check_branch
      %13 = sbr.rel (0) target = $region5
    $region4: #{visual_prediction_head_transform.1} parent=1 // pred_region
      _
    $region5: #{visual_prediction_head_transform.1} parent=1 // pred_fallthru
      _
    // Predicated region
    $region6: #{visual_prediction_head_transform.1} parent=1 // pred_check
      _
    $region7: #{visual_prediction_head_transform.1} parent=1 // pred_check_branch
      %15 = sbr.rel (0) target = $region9
    $region8: #{visual_prediction_head_transform.1} parent=1 // pred_region
      %s17 = ssub.s32 512, 512
      %18 = vsyncadd [#allocation3], %s17
      %s19 = sshll.u32 [#allocation2], 4
      %s20 = int_to_ptr.vmem [resolvable:$true] %s19
      %25 = dma.hbm_to_vmem [thread:$0]  %s1, 512, %s20, [#allocation3], 128, 128, 8
    $region9: #{visual_prediction_head_transform.1} parent=1 // pred_fallthru
      _
    // Predicated region
    $region10: #{visual_prediction_head_transform.1} parent=1 // pred_check
      _
    $region11: #{visual_prediction_head_transform.1} parent=1 // pred_check_branch
      %27 = sbr.rel (0) target = $region13
    $region12: #{visual_prediction_head_transform.1} parent=1 // pred_region
      _
    $region13: #{visual_prediction_head_transform.1} parent=1 // pred_fallthru
      _
    // Predicated region
    $region14: #{visual_prediction_head_transform.1} parent=1 // pred_check
      _
    $region15: #{visual_prediction_head_transform.1} parent=1 // pred_check_branch
      %29 = sbr.rel (0) target = $region17
    $region16: #{visual_prediction_head_transform.1} parent=1 // pred_region
      _
    $region17: #{visual_prediction_head_transform.1} parent=1 // pred_fallthru
      _
    // Predicated region
    $region18: #{visual_prediction_head_transform.1} parent=1 // pred_check
      _
    $region19: #{visual_prediction_head_transform.1} parent=1 // pred_check_branch
      %31 = sbr.rel (0) target = $region21
    $region20: #{visual_prediction_head_transform.1} parent=1 // pred_region
      _
    $region21: #{visual_prediction_head_transform.1} parent=1 // pred_fallthru
      _
    // Predicated region
    $region22: #{visual_prediction_head_transform.1} parent=1 // pred_check
      _
    $region23: #{visual_prediction_head_transform.1} parent=1 // pred_check_branch
      %33 = sbr.rel (0) target = $region25
    $region24: #{visual_prediction_head_transform.1} parent=1 // pred_region
      %34 = dma.done [#allocation3], 512
    $region25: #{visual_prediction_head_transform.1} parent=1 // pred_fallthru
      _
    %v35 = vld [vmem:[%s0] sm:$0xff]
    %v36 = vld [vmem:[%s0 + $0x8] sm:$0xff]
    %v37 = vld [vmem:[#allocation2] sm:$0xff]
    %v38 = vld [vmem:[#allocation2 + $0x8] sm:$0xff]
    %v39 = vld [vmem:[#allocation2 + $0x10] sm:$0xff]
    %v40 = vld [vmem:[#allocation2 + $0x18] sm:$0xff]
    %v41 = vld [vmem:[%s2] sm:$0x1]
    %v43 = vlaneseq
    %v44 = vshrl.u32 %v43, 7
    %v45 = vsub.s32 0, %v44
    %v46 = vrot.slane %v41, %v45
    %vm48 = vcmask 261120
    %v50 = vsel %vm48, %v35, 0
    %v53 = vsel %vm48, %v36, 0
    %55 = vmatprep.subr.mxu0 0.0
    %56 = vmatpush1.msra.mxu0 %v37
    %57 = vmatprep.subr.mxu0 0.0
    %58 = vmatpush1.msra.mxu0 %v38
    %59 = vmatprep.subr.mxu0 0.0
    %60 = vmatpush1.msra.mxu0 %v39
    %61 = vmatprep.subr.mxu0 0.0
    %62 = vmatpush1.msra.mxu0 %v40
    %63 = vmatprep.subr.mxu0 0.0
    %64 = vmatpush1.msra.mxu0 0.0
    %65 = vmatprep.subr.mxu0 0.0
    %66 = vmatpush1.msra.mxu0 0.0
    %67 = vmatprep.subr.mxu0 0.0
    %68 = vmatpush1.msra.mxu0 0.0
    %69 = vmatprep.subr.mxu0 0.0
    %70 = vmatpush1.msra.mxu0 0.0
    %71 = vmatprep.subr.mxu0 0.0
    %72 = vmatpush1.msra.mxu0 0.0
    %73 = vmatprep.subr.mxu0 0.0
    %74 = vmatpush1.msra.mxu0 0.0
    %75 = vmatprep.subr.mxu0 0.0
    %76 = vmatpush1.msra.mxu0 0.0
    %77 = vmatprep.subr.mxu0 0.0
    %78 = vmatpush1.msra.mxu0 0.0
    %79 = vmatprep.subr.mxu0 0.0
    %80 = vmatpush1.msra.mxu0 0.0
    %81 = vmatprep.subr.mxu0 0.0
    %82 = vmatpush1.msra.mxu0 0.0
    %83 = vmatprep.subr.mxu0 0.0
    %84 = vmatpush1.msra.mxu0 0.0
    %85 = vmatprep.subr.mxu0 0.0
    %86 = vmatpush1.msra.mxu0 0.0
    %87 = vmatprep.subr.mxu0 0.0
    %88 = vmatpush1.msra.mxu0 0.0
    %89 = vmatprep.subr.mxu0 0.0
    %90 = vmatpush1.msra.mxu0 0.0
    %91 = vmatprep.subr.mxu0 0.0
    %92 = vmatpush1.msra.mxu0 0.0
    %93 = vmatprep.subr.mxu0 0.0
    %94 = vmatpush1.msra.mxu0 0.0
    %95 = vmatprep.subr.mxu0 0.0
    %96 = vmatpush1.msra.mxu0 0.0
    %97 = vmatprep.subr.mxu0 0.0
    %98 = vmatpush1.msra.mxu0 0.0
    %99 = vmatprep.subr.mxu0 0.0
    %100 = vmatpush1.msra.mxu0 0.0
    %101 = vmatprep.subr.mxu0 0.0
    %102 = vmatpush1.msra.mxu0 0.0
    %103 = vmatprep.subr.mxu0 0.0
    %104 = vmatpush1.msra.mxu0 0.0
    %105 = vmatprep.subr.mxu0 0.0
    %106 = vmatpush1.msra.mxu0 0.0
    %107 = vmatprep.subr.mxu0 0.0
    %108 = vmatpush1.msra.mxu0 0.0
    %109 = vmatprep.subr.mxu0 0.0
    %110 = vmatpush1.msra.mxu0 0.0
    %111 = vmatprep.subr.mxu0 0.0
    %112 = vmatpush1.msra.mxu0 0.0
    %113 = vmatprep.subr.mxu0 0.0
    %114 = vmatpush1.msra.mxu0 0.0
    %115 = vmatprep.subr.mxu0 0.0
    %116 = vmatpush1.msra.mxu0 0.0
    %117 = vmatprep.subr.mxu0 0.0
    %118 = vmatpush1.msra.mxu0 0.0
    %119 = vmatprep.mubr.f32.mxu0 0.0
    %120 = vmatmul.mubr.f32.gmra.mrb[0].mxu0 %v50
    %v121 = vpop.f32.mrb[0].mxu0
    %v122 = vadd.f32 %v46, %v121
    %v123 = vpop.f32.mrb[0].mxu0
    %124 = vmatprep.mubr.f32.mxu0 0.0
    %125 = vmatmul.mubr.f32.gmra.mrb[0].mxu0 %v53
    %v126 = vpop.f32.mrb[0].mxu0
    %v127 = vadd.f32 %v46, %v126
    %v128 = vpop.f32.mrb[0].mxu0
    %129 = vdwg.mxu0
    %v130 = vmul.f32 %v122, 0.5
    %v131 = vmul.f32 %v127, 0.5
    %v132 = vmul.f32 %v122, 0.70710677
    %v133 = vmul.f32 %v127, 0.70710677
    %v134 = vand.u32 2147483647, %v132
    %v135 = vand.u32 2147483647, %v133
    %v136 = vmul.f32 %v134, 0.3275911
    %v137 = vmul.f32 %v135, 0.3275911
    %v138 = vadd.f32 %v136, 1.0
    %v139 = vadd.f32 %v137, 1.0
    %v140 = vrcp.pop %v138
    %v141 = vmul.f32 1.0, %v140
    %v142 = vrcp.pop %v139
    %v143 = vmul.f32 1.0, %v142
    %v144 = vmul.f32 %v141, 1.0614054
    %v145 = vmul.f32 %v143, 1.0614054
    %v146 = vadd.f32 %v144, -1.4531521
    %v147 = vadd.f32 %v145, -1.4531521
    %v148 = vmul.f32 %v146, %v141
    %v149 = vmul.f32 %v147, %v143
    %v150 = vadd.f32 %v148, 1.4214138
    %v151 = vadd.f32 %v149, 1.4214138
    %v152 = vmul.f32 %v150, %v141
    %v153 = vmul.f32 %v151, %v143
    %v154 = vadd.f32 %v152, -0.28449672
    %v155 = vadd.f32 %v153, -0.28449672
    %v156 = vmul.f32 %v154, %v141
    %v157 = vmul.f32 %v155, %v143
    %v158 = vadd.f32 %v156, 0.2548296
    %v159 = vadd.f32 %v157, 0.2548296
    %v160 = vmul.f32 %v158, %v141
    %v161 = vmul.f32 %v159, %v143
    %v162 = vsub.f32 0.0, %v134
    %v163 = vsub.f32 0.0, %v135
    %v164 = vmul.f32 %v162, %v134
    %v165 = vmul.f32 %v163, %v135
    %v166 = vmul.f32 %v164, 1.442695
    %v167 = vpow.pop %v166
    %v168 = vmul.f32 %v165, 1.442695
    %v169 = vpow.pop %v168
    %v170 = vmul.f32 %v160, %v167
    %v171 = vmul.f32 %v161, %v169
    %v172 = vsub.f32 1.0, %v170
    %v173 = vsub.f32 1.0, %v171
    %vm174 = vcmp.ge.f32.partialorder %v132, 0.0
    %vm175 = vcmp.ge.f32.partialorder %v133, 0.0
    %v176 = vsub.f32 0.0, %v172
    %v177 = vsub.f32 0.0, %v173
    %v178 = vsel %vm174, %v172, %v176
    %v179 = vsel %vm175, %v173, %v177
    %v180 = vadd.f32 %v178, 1.0
    %v181 = vadd.f32 %v179, 1.0
    %v182 = vmul.f32 %v130, %v180
    %v183 = vmul.f32 %v131, %v181
    %v184 = vsel %vm48, %v182, 0.0
    %185 = vadd.xlane.f32.xlu0 %v184
    %v186 = vpop.xlane.xlu0 %185
    %v187 = vsel %vm48, %v183, 0.0
    %188 = vadd.xlane.f32.xlu0 %v187
    %v189 = vpop.xlane.xlu0 %188
    %v190 = vrcp.pop 32.0
    %v191 = vmul.f32 %v186, %v190
    %v192 = vmul.f32 %v189, %v190
    %v193 = vsub.f32 %v182, %v191
    %v194 = vsub.f32 %v183, %v192
    %v195 = vmul.f32 %v193, %v193
    %v196 = vmul.f32 %v194, %v194
    %v197 = vsel %vm48, %v195, 0.0
    %198 = vadd.xlane.f32.xlu0 %v197
    %v199 = vpop.xlane.xlu0 %198
    %v200 = vsel %vm48, %v196, 0.0
    %201 = vadd.xlane.f32.xlu0 %v200
    %v202 = vpop.xlane.xlu0 %201
    %v203 = vmul.f32 %v199, %v190
    %v204 = vmul.f32 %v202, %v190
    %v205 = vadd.f32 %v203, 1e-12
    %v206 = vadd.f32 %v204, 1e-12
    %v207 = vrsqrt.pop %v205
    %v208 = vrsqrt.pop %v206
    %v209 = vmul.f32 %v193, %v207
    %v210 = vmul.f32 %v194, %v208
    %v211 = vld [vmem:[%s3] sm:$0x1]
    %v213 = vlaneseq
    %v214 = vshrl.u32 %v213, 7
    %v215 = vsub.s32 0, %v214
    %v216 = vrot.slane %v211, %v215
    %v218 = vmul.f32 %v209, %v216
    %v219 = vmul.f32 %v210, %v216
    %v220 = vld [vmem:[%s4] sm:$0x1]
    %v222 = vlaneseq
    %v223 = vshrl.u32 %v222, 7
    %v224 = vsub.s32 0, %v223
    %v225 = vrot.slane %v220, %v224
    %v227 = vadd.f32 %v218, %v225
    %v228 = vadd.f32 %v219, %v225
    %229 = vst.msk [vmem:[#allocation5] sm:$0xff] %vm48, %v227
    %230 = vst.msk [vmem:[#allocation5 + $0x8] sm:$0xff] %vm48, %v228
    // Predicated region
    $region26: #{visual_prediction_head_transform.1} parent=1 // pred_check
      _
    $region27: #{visual_prediction_head_transform.1} parent=1 // pred_check_branch
      %232 = sbr.rel (0) target = $region29
    $region28: #{visual_prediction_head_transform.1} parent=1 // pred_region
      %s234 = ssub.s32 256, 256
      %235 = vsyncadd [#allocation4], %s234
      %s236 = sshll.u32 [#allocation5], 4
      %s237 = int_to_ptr.vmem [resolvable:$true] %s236
      %242 = dma.vmem_to_hbm [thread:$0]  %s237, 256, %s5, [#allocation4], 128, 128, 8
    $region29: #{visual_prediction_head_transform.1} parent=1 // pred_fallthru
      _
    // Predicated region
    $region30: #{visual_prediction_head_transform.1} parent=1 // pred_check
      _
    $region31: #{visual_prediction_head_transform.1} parent=1 // pred_check_branch
      %244 = sbr.rel (0) target = $region33
    $region32: #{visual_prediction_head_transform.1} parent=1 // pred_region
      %245 = dma.done [#allocation4], 256
    $region33: #{visual_prediction_head_transform.1} parent=1 // pred_fallthru
      _
    %246 = vsyncpa [#allocation3], 1
    %247 = vsyncpa [#allocation4], 1

</llo_original>
